<compile_context>
chip_gen: v5e
topology: v5e:2x2
jax: 0.10.0
libtpu: 0.0.40
codegen_flags: <defaults>
</compile_context>

<pallas_src>
import functools

import jax
import jax.numpy as jnp
from jax.experimental import pallas as pl
from jax.experimental.pallas import tpu as pltpu


def _unfold_kernel_wide(x_ref, o_ref, *, T, V, padding, window_size, stride,
                        dilation, out_t):
    """Builds the whole (cb, out_t, window_size*V) slab in registers and does a
    single wide store (one vst stream at window_size*V lane occupancy)."""
    cb = x_ref.shape[0]
    x = x_ref[...]                                          # (cb, T, V)
    if padding > 0:
        zpad = jnp.zeros((cb, padding, V), dtype=x.dtype)
        xp = jnp.concatenate([zpad, x, zpad], axis=1)       # (cb, T+2p, V) regs
    else:
        xp = x
    cols = []
    for w in range(window_size):                            # static, unrolled
        start = w * dilation
        if stride == 1:
            cols.append(xp[:, start:start + out_t, :])
        else:
            rows = [xp[:, start + t * stride:start + t * stride + 1, :]
                    for t in range(out_t)]
            cols.append(jnp.concatenate(rows, axis=1))
    # out[:, t, w*V + v] = x_pad[:, t*stride + w*dilation, v]
    o_ref[...] = jnp.concatenate(cols, axis=-1)


def _unfold_kernel_narrow(x_ref, o_ref, *, T, V, padding, window_size, stride,
                          dilation, out_t):
    """Fallback kernel: static shifted copies x_ref -> o_ref (no staging
    scratch), per-window narrow lane stores.  Uses only static ref slices."""
    cb = x_ref.shape[0]
    dt = x_ref.dtype
    for w in range(window_size):
        start = w * dilation                     # row index in zero-padded T
        if stride == 1:
            lo = max(0, min(out_t, padding - start))
            hi = max(lo, min(out_t, T + padding - start))
            if lo > 0:
                o_ref[:, 0:lo, w * V:(w + 1) * V] = jnp.zeros((cb, lo, V), dt)
            if hi > lo:
                o_ref[:, lo:hi, w * V:(w + 1) * V] = (
                    x_ref[:, lo + start - padding:hi + start - padding, :])
            if hi < out_t:
                o_ref[:, hi:out_t, w * V:(w + 1) * V] = (
                    jnp.zeros((cb, out_t - hi, V), dt))
        else:
            for t in range(out_t):
                src = t * stride + start - padding
                if 0 <= src < T:
                    o_ref[:, t:t + 1, w * V:(w + 1) * V] = x_ref[:, src:src + 1, :]
                else:
                    o_ref[:, t:t + 1, w * V:(w + 1) * V] = jnp.zeros((cb, 1, V), dt)


def _padded_tile_bytes(rows, cols, dtype):
    """VMEM footprint of a (rows, cols) slab after (sublane, 128) tiling.
    Sublane tile depends on dtype packing: f32 -> 8, bf16 -> 16, int8 -> 32."""
    itemsize = jnp.dtype(dtype).itemsize
    sublane = 8 * max(1, 4 // itemsize)
    r = -(-rows // sublane) * sublane
    c = -(-cols // 128) * 128
    return r * c * itemsize


_BLOCK_BYTES_BUDGET = 8 << 20      # ~8 MiB of double-buffered blocks per step
_MIN_GRID_STEPS = 4                # >= 2 steps per TensorCore on 2-TC chips

_wide_store_failed = False         # set if the wide-store kernel fails to lower


def _unfold_params(window_size, stride, dilation, T):
    padding = (window_size + (window_size - 1) * (dilation - 1) - 1) // 2
    eff_k = dilation * (window_size - 1) + 1
    out_t = (T + 2 * padding - eff_k) // stride + 1
    return padding, out_t


def _make_call(kernel_fn, NC, CB, T, V, out_t, WV, dtype, vmem_limit, kw):
    kernel = functools.partial(kernel_fn, **kw)
    return pl.pallas_call(
        kernel,
        out_shape=jax.ShapeDtypeStruct((NC, out_t, WV), dtype),
        grid=(pl.cdiv(NC, CB),),
        in_specs=[pl.BlockSpec((CB, T, V), lambda i: (i, 0, 0))],
        out_specs=pl.BlockSpec((CB, out_t, WV), lambda i: (i, 0, 0)),
        compiler_params=pltpu.CompilerParams(
            dimension_semantics=("parallel",),
            vmem_limit_bytes=vmem_limit,
        ),
    )


def unfold_temporal_windows(x, window_size, window_stride=1, window_dilation=1):
    global _wide_store_failed
    N, C, T, V = x.shape
    padding, out_t = _unfold_params(window_size, window_stride, window_dilation, T)
    WV = window_size * V
    NC = N * C
    x2 = x.reshape(NC, T, V)                       # metadata-only collapse

    # Block sizing: fixed few-MiB budget for the double-buffered input+output
    # blocks (already ~85% of HBM roofline), capped so the grid keeps at least
    # _MIN_GRID_STEPS steps (megacore sharding + DMA/compute overlap).  No
    # divisibility requirement: the last block may be partial (masked).
    bytes_per_slice = (2 * _padded_tile_bytes(T, V, x.dtype)
                       + 2 * _padded_tile_bytes(out_t, WV, x.dtype))
    cb_bytes_cap = max(1, _BLOCK_BYTES_BUDGET // bytes_per_slice)
    cb_grid_cap = max(1, NC // _MIN_GRID_STEPS)
    CB = int(max(1, min(NC, cb_bytes_cap, cb_grid_cap)))

    try:
        vmem_cap = int(pltpu.get_tpu_info().vmem_capacity_bytes)
    except Exception:
        vmem_cap = 64 << 20                        # v7x per-TensorCore VMEM
    ceiling = max(16 << 20, vmem_cap - (12 << 20)) # leave compiler headroom
    needed = CB * bytes_per_slice
    vmem_limit = int(min(ceiling, max(32 << 20, needed + (8 << 20))))

    kw = dict(T=T, V=V, padding=padding, window_size=window_size,
              stride=window_stride, dilation=window_dilation, out_t=out_t)

    if not _wide_store_failed:
        try:
            call = _make_call(_unfold_kernel_wide, NC, CB, T, V, out_t, WV,
                              x.dtype, vmem_limit, kw)
            # block here so a lowering/compile problem surfaces inside the try
            out = jax.block_until_ready(call(x2))
            return out.reshape(N, C, out_t, window_size, V)
        except Exception:
            _wide_store_failed = True              # use narrow-store fallback
    call = _make_call(_unfold_kernel_narrow, NC, CB, T, V, out_t, WV,
                      x.dtype, vmem_limit, kw)
    out = call(x2)
    # Splitting adjacent contiguous dims is metadata-only.
    return out.reshape(N, C, out_t, window_size, V)


def _reference_unfold(x, window_size, stride, dilation):
    """Pure-JAX reference reproducing the PyTorch module semantics."""
    N, C, T, V = x.shape
    pad, out_t = _unfold_params(window_size, stride, dilation, T)
    xp = jnp.pad(x, ((0, 0), (0, 0), (pad, pad), (0, 0)))
    cols = []
    for w in range(window_size):
        start = w * dilation
        stop = start + stride * (out_t - 1) + 1
        cols.append(xp[:, :, start:stop:stride, :])
    return jnp.stack(cols, axis=3)                 # (N, C, out_t, W, V)


if __name__ == "__main__":
    # UnfoldTemporalWindows has no learnable parameters; only hyperparams.
    key = jax.random.PRNGKey(0)
    N, C, T, V = 2, 4, 16, 16
    x = jax.random.normal(key, (N, C, T, V), dtype=jnp.float32)

    # (window_size, stride, dilation): default path + dilation>1 + stride>1
    cases = [(3, 1, 1), (5, 1, 2), (3, 2, 1)]
    for (ws, st, dil) in cases:
        out = unfold_temporal_windows(x, ws, st, dil)
        out = jax.block_until_ready(out)
        ref = _reference_unfold(x, ws, st, dil)
        assert out.shape == ref.shape, (out.shape, ref.shape)
        assert jnp.allclose(out, ref), (
            f"Pallas output mismatch for window={ws} stride={st} dilation={dil}")

    print("KERNEL_OK")
</pallas_src>

<mosaic_0001>
module attributes {stable_mosaic.version = 11 : i64} {
  func.func @_unfold_kernel_wide(%arg0: i32, %arg1: memref<2x16x16xf32, #tpu.memory_space<vmem>>, %arg2: memref<2x16x48xf32, #tpu.memory_space<vmem>>) attributes {dimension_semantics = [#tpu.dimension_semantics<parallel>], iteration_bounds = array<i64: 4>, scalar_prefetch = 0 : i64, scratch_operands = 0 : i64, tpu.core_type = #tpu.core_type<tc>, window_params = [{transform_indices = @transform_0, window_bounds = array<i64: 2, 16, 16>}, {transform_indices = @transform_1, window_bounds = array<i64: 2, 16, 48>}]} {
    %c0 = arith.constant 0 : index
    %c0_0 = arith.constant 0 : index
    %c0_1 = arith.constant 0 : index
    %0 = vector.load %arg1[%c0, %c0_0, %c0_1] : memref<2x16x16xf32, #tpu.memory_space<vmem>>, vector<2x16x16xf32>
    %cst = arith.constant 0.000000e+00 : f32
    %1 = vector.broadcast %cst : f32 to vector<2x1x16xf32>
    %2 = tpu.concatenate %1, %0, %1 in 1 : vector<2x1x16xf32>, vector<2x16x16xf32>, vector<2x1x16xf32> -> vector<2x18x16xf32>
    %3 = vector.extract_strided_slice %2 {offsets = [0, 0, 0], sizes = [2, 16, 16], strides = [1, 1, 1]} : vector<2x18x16xf32> to vector<2x16x16xf32>
    %4 = vector.extract_strided_slice %2 {offsets = [0, 1, 0], sizes = [2, 16, 16], strides = [1, 1, 1]} : vector<2x18x16xf32> to vector<2x16x16xf32>
    %5 = vector.extract_strided_slice %2 {offsets = [0, 2, 0], sizes = [2, 16, 16], strides = [1, 1, 1]} : vector<2x18x16xf32> to vector<2x16x16xf32>
    %6 = tpu.concatenate %3, %4, %5 in 2 : vector<2x16x16xf32>, vector<2x16x16xf32>, vector<2x16x16xf32> -> vector<2x16x48xf32>
    %c0_2 = arith.constant 0 : index
    %c0_3 = arith.constant 0 : index
    %c0_4 = arith.constant 0 : index
    %7 = vector.load %arg2[%c0_2, %c0_3, %c0_4] : memref<2x16x48xf32, #tpu.memory_space<vmem>>, vector<2x16x48xf32>
    tpu.vector_store %arg2[%c0_2, %c0_3, %c0_4], %6 {strides = array<i32>} : memref<2x16x48xf32, #tpu.memory_space<vmem>>, vector<2x16x48xf32>,
    return
  }
  func.func @transform_0(%arg0: i32) -> (i32, i32, i32) {
    %c0_i32 = arith.constant 0 : i32
    %c0_i32_0 = arith.constant 0 : i32
    %c0_i32_1 = arith.constant 0 : i32
    return %arg0, %c0_i32, %c0_i32_0 : i32, i32, i32
  }
  func.func @transform_1(%arg0: i32) -> (i32, i32, i32) {
    %c0_i32 = arith.constant 0 : i32
    %c0_i32_0 = arith.constant 0 : i32
    %c0_i32_1 = arith.constant 0 : i32
    return %arg0, %c0_i32, %c0_i32_0 : i32, i32, i32
  }
}

module attributes {stable_mosaic.version = 11 : i64} {
  func.func @_unfold_kernel_narrow(%arg0: i32, %arg1: memref<2x16x16xf32, #tpu.memory_space<vmem>>, %arg2: memref<2x16x48xf32, #tpu.memory_space<vmem>>) attributes {dimension_semantics = [#tpu.dimension_semantics<parallel>], iteration_bounds = array<i64: 4>, scalar_prefetch = 0 : i64, scratch_operands = 0 : i64, tpu.core_type = #tpu.core_type<tc>, window_params = [{transform_indices = @transform_0, window_bounds = array<i64: 2, 16, 16>}, {transform_indices = @transform_1, window_bounds = array<i64: 2, 16, 48>}]} {
    %cst = arith.constant 0.000000e+00 : f32
    %0 = vector.broadcast %cst : f32 to vector<2x1x16xf32>
    %c0 = arith.constant 0 : index
    %c0_0 = arith.constant 0 : index
    %c0_1 = arith.constant 0 : index
    %1 = vector.load %arg2[%c0, %c0_0, %c0_1] : memref<2x16x48xf32, #tpu.memory_space<vmem>>, vector<2x1x16xf32>
    tpu.vector_store %arg2[%c0, %c0_0, %c0_1], %0 {strides = array<i32>} : memref<2x16x48xf32, #tpu.memory_space<vmem>>, vector<2x1x16xf32>,
    %c0_2 = arith.constant 0 : index
    %c0_3 = arith.constant 0 : index
    %c0_4 = arith.constant 0 : index
    %2 = vector.load %arg1[%c0_2, %c0_3, %c0_4] : memref<2x16x16xf32, #tpu.memory_space<vmem>>, vector<2x15x16xf32>
    %c0_5 = arith.constant 0 : index
    %c1 = arith.constant 1 : index
    %c0_6 = arith.constant 0 : index
    %3 = vector.load %arg2[%c0_5, %c1, %c0_6] : memref<2x16x48xf32, #tpu.memory_space<vmem>>, vector<2x15x16xf32>
    tpu.vector_store %arg2[%c0_5, %c1, %c0_6], %2 {strides = array<i32>} : memref<2x16x48xf32, #tpu.memory_space<vmem>>, vector<2x15x16xf32>,
    %c0_7 = arith.constant 0 : index
    %c0_8 = arith.constant 0 : index
    %c0_9 = arith.constant 0 : index
    %4 = vector.load %arg1[%c0_7, %c0_8, %c0_9] : memref<2x16x16xf32, #tpu.memory_space<vmem>>, vector<2x16x16xf32>
    %c0_10 = arith.constant 0 : index
    %c0_11 = arith.constant 0 : index
    %c16 = arith.constant 16 : index
    %5 = vector.load %arg2[%c0_10, %c0_11, %c16] : memref<2x16x48xf32, #tpu.memory_space<vmem>>, vector<2x16x16xf32>
    tpu.vector_store %arg2[%c0_10, %c0_11, %c16], %4 {strides = array<i32>} : memref<2x16x48xf32, #tpu.memory_space<vmem>>, vector<2x16x16xf32>,
    %c0_12 = arith.constant 0 : index
    %c1_13 = arith.constant 1 : index
    %c0_14 = arith.constant 0 : index
    %6 = vector.load %arg1[%c0_12, %c1_13, %c0_14] : memref<2x16x16xf32, #tpu.memory_space<vmem>>, vector<2x15x16xf32>
    %c0_15 = arith.constant 0 : index
    %c0_16 = arith.constant 0 : index
    %c32 = arith.constant 32 : index
    %7 = vector.load %arg2[%c0_15, %c0_16, %c32] : memref<2x16x48xf32, #tpu.memory_space<vmem>>, vector<2x15x16xf32>
    tpu.vector_store %arg2[%c0_15, %c0_16, %c32], %6 {strides = array<i32>} : memref<2x16x48xf32, #tpu.memory_space<vmem>>, vector<2x15x16xf32>,
    %cst_17 = arith.constant 0.000000e+00 : f32
    %8 = vector.broadcast %cst_17 : f32 to vector<2x1x16xf32>
    %c0_18 = arith.constant 0 : index
    %c15 = arith.constant 15 : index
    %c32_19 = arith.constant 32 : index
    %9 = vector.load %arg2[%c0_18, %c15, %c32_19] : memref<2x16x48xf32, #tpu.memory_space<vmem>>, vector<2x1x16xf32>
    tpu.vector_store %arg2[%c0_18, %c15, %c32_19], %8 {strides = array<i32>} : memref<2x16x48xf32, #tpu.memory_space<vmem>>, vector<2x1x16xf32>,
    return
  }
  func.func @transform_0(%arg0: i32) -> (i32, i32, i32) {
    %c0_i32 = arith.constant 0 : i32
    %c0_i32_0 = arith.constant 0 : i32
    %c0_i32_1 = arith.constant 0 : i32
    return %arg0, %c0_i32, %c0_i32_0 : i32, i32, i32
  }
  func.func @transform_1(%arg0: i32) -> (i32, i32, i32) {
    %c0_i32 = arith.constant 0 : i32
    %c0_i32_0 = arith.constant 0 : i32
    %c0_i32_1 = arith.constant 0 : i32
    return %arg0, %c0_i32, %c0_i32_0 : i32, i32, i32
  }
}

</mosaic_0001>

<llo_original>
// kernel: tpu_custom_call.1
$region0: #{tpu_custom_call.1}
  #allocation0 [shape = 'u32[]', space=smem, size = 0x4, offset = 0x4, fixed_abs, tag = 'smem constant byte address 0x4 - core index']
  #allocation1 [shape = 'u32[72,128]{1,0:T(1,128)}', space=vmem, size = 0x9000, scoped, tag = 'internal scratch']
  %s0 = inlined_call_operand.hbm [shape: f32[8,16,16], index: 0, kind: input, shape index: {}]
  %s1 = inlined_call_operand.hbm [shape: f32[8,16,48], index: 1, kind: output, shape index: {}]
  %s2 = sld [smem:[#allocation0]]
  $region41: #{tpu_custom_call.1} parent=0
    _
  %s4 = ssub.s32 1, %s2
  %s5 = scalar_select 0, %s4, %s2
  $region1: #{tpu_custom_call.1} parent=0
    #allocation2 [shape = 'u8[32768]{0}', space=vmem, size = 0x8000, scoped, tag = 'input window, operand 0']
    #allocation3 [shape = 's32[2]{0}', space=sflag, size = 0x8, scoped, tag = 'scoped memory for tpu_custom_call.1']
    #allocation4 [shape = 's32[2]{0}', space=sflag, size = 0x8, scoped, tag = 'scoped memory for tpu_custom_call.1']
    #allocation5 [shape = 'u8[32768]{0}', space=vmem, size = 0x8000, scoped, tag = 'output window, operand 0']
    %6 = vsyncpa [#allocation3], 0
    %s7 = scalar_lea.sflag [#allocation3], 1
    %8 = vsyncpa %s7, 0
    %9 = vsyncpa [#allocation4], 0
    %s10 = scalar_lea.sflag [#allocation4], 1
    %11 = vsyncpa %s10, 0
    loop: start=0, step=1, limit=6
    $region2: #{tpu_custom_call.1} parent=1 // loop_pre_header
      _
    $region3: #{tpu_custom_call.1} parent=1 // loop_header
      %s13 = sphi 0, %s17
      %p14 = scmp.ge.s32.totalorder %s13, 6
      %s23 = sphi 0, %s25
      %s26 = sphi 0, %s23
      %s27 = sphi 0, %s26
      %s43 = sphi 0, %s27
      %s49 = sphi 0, %s51
      %s52 = sphi 0, %s49
      %s53 = sphi 0, %s52
      %s69 = sphi 0, %s53
    $region4: #{tpu_custom_call.1} parent=1 // loop_header_branch
      %16 = sbr.rel (%p14) target = $region8
    $region5: #{tpu_custom_call.1} parent=1 // loop_body
      %s18 = ssub.s32 %s13, 1
      %s19 = ssub.s32 %s13, 2
      %s20 = sadd.s32 %s13, 1
      %s21 = ssub.s32 %s13, %s20
      %p22 = scmp.eq.s32.totalorder %s21, 0
      %s24 = sadd.s32 %s23, 1
      %s25 = scalar_select %p22, %s23, %s24
      %p28 = pneg %p22
      %p29 = scmp.eq.s32.totalorder %s13, 3
      %p30 = por %p28, %p29
      %p31 = scmp.ne.s32.totalorder %s23, %s26
      %p32 = scmp.eq.s32.totalorder %s13, 0
      %p33 = por %p31, %p32
      %p34 = scmp.ne.s32.totalorder %s23, %s26
      %p35 = scmp.eq.s32.totalorder %s18, 3
      %p36 = por %p34, %p35
      %p37 = scmp.ne.s32.totalorder %s26, %s27
      %p38 = scmp.eq.s32.totalorder %s18, 0
      %p39 = por %p37, %p38
      %p40 = scmp.ne.s32.totalorder %s26, %s27
      %p41 = scmp.eq.s32.totalorder %s19, 3
      %p42 = por %p40, %p41
      %p44 = scmp.ne.s32.totalorder %s27, %s43
      %p45 = scmp.eq.s32.totalorder %s19, 0
      %p46 = por %p44, %p45
      %s47 = ssub.s32 %s13, %s20
      %p48 = scmp.eq.s32.totalorder %s47, 0
      %s50 = sadd.s32 %s49, 1
      %s51 = scalar_select %p48, %s49, %s50
      %p54 = pneg %p48
      %p55 = scmp.eq.s32.totalorder %s13, 3
      %p56 = por %p54, %p55
      %p57 = scmp.ne.s32.totalorder %s49, %s52
      %p58 = scmp.eq.s32.totalorder %s13, 0
      %p59 = por %p57, %p58
      %p60 = scmp.ne.s32.totalorder %s49, %s52
      %p61 = scmp.eq.s32.totalorder %s18, 3
      %p62 = por %p60, %p61
      %p63 = scmp.ne.s32.totalorder %s52, %s53
      %p64 = scmp.eq.s32.totalorder %s18, 0
      %p65 = por %p63, %p64
      %p66 = scmp.ne.s32.totalorder %s52, %s53
      %p67 = scmp.eq.s32.totalorder %s19, 3
      %p68 = por %p66, %p67
      %p70 = scmp.ne.s32.totalorder %s53, %s69
      %p71 = scmp.eq.s32.totalorder %s19, 0
      %p72 = por %p70, %p71
      %p73 = scmp.le.s32.totalorder 1, %s13
      %p74 = scmp.lt.s32.totalorder %s13, 5
      %p75 = pnand %p73, %p74
      %p76 = pneg %p75
      // Predicated region
      $region9: #{tpu_custom_call.1} parent=5 // pred_check
        _
      $region10: #{tpu_custom_call.1} parent=5 // pred_check_branch
        %78 = sbr.rel (%p75) target = $region12
      $region11: #{tpu_custom_call.1} parent=5 // pred_region
        %s79 = ssub.s32 %s13, 1
      $region12: #{tpu_custom_call.1} parent=5 // pred_fallthru
        _
      %p80 = scmp.lt.s32.totalorder %s13, 4
      // Predicated region
      $region13: #{tpu_custom_call.1} parent=5 // pred_check
        %p81 = pneg %p80
      $region14: #{tpu_custom_call.1} parent=5 // pred_check_branch
        %83 = sbr.rel (%p81) target = $region16
      $region15: #{tpu_custom_call.1} parent=5 // pred_region
        // Predicated region
        $region17: #{tpu_custom_call.1} parent=15 // pred_check
          %p84 = pneg %p33
        $region18: #{tpu_custom_call.1} parent=15 // pred_check_branch
          %86 = sbr.rel (%p84) target = $region20
        $region19: #{tpu_custom_call.1} parent=15 // pred_region
          %s87 = sand.u32 %s23, 1
          %s88 = scalar_lea.sflag [#allocation3], %s87
          %s89 = sand.u32 %s23, 1
          %s90 = smul.addr %s89, 32
          %s91 = scalar_lea.vmem [#allocation2], %s90
          %s92 = smul.u32 2, %s13
          %94 = vsyncadd %s88, 0
          %s95 = smul.addr %s92, 2
          %s96 = smul.addr %s95, 8
          %s97 = scalar_lea.hbm %s0, %s96
          %s98 = sshll.u32 %s97, 4
          %s99 = int_to_ptr.hbm [resolvable:$true] %s98
          %s100 = sshll.u32 %s91, 4
          %s101 = int_to_ptr.vmem [resolvable:$true] %s100
          %106 = dma.hbm_to_vmem [thread:$0]  %s99, 512, %s101, %s88, 128, 128, 8
        $region20: #{tpu_custom_call.1} parent=15 // pred_fallthru
          _
      $region16: #{tpu_custom_call.1} parent=5 // pred_fallthru
        _
      %p107 = scmp.le.s32.totalorder 1, %s13
      %p108 = scmp.lt.s32.totalorder %s13, 5
      %p109 = pnand %p107, %p108
      %p110 = pneg %p109
      // Predicated region
      $region21: #{tpu_custom_call.1} parent=5 // pred_check
        _
      $region22: #{tpu_custom_call.1} parent=5 // pred_check_branch
        %112 = sbr.rel (%p109) target = $region24
      $region23: #{tpu_custom_call.1} parent=5 // pred_region
        %s113 = ssub.s32 %s13, 1
        %s114 = sand.u32 %s26, 1
        %s115 = scalar_lea.sflag [#allocation3], %s114
        %s116 = sand.u32 %s26, 1
        %s117 = smul.addr %s116, 32
        %s118 = scalar_lea.vmem [#allocation2], %s117
        // Predicated region
        $region25: #{tpu_custom_call.1} parent=23 // pred_check
          %p119 = pneg %p39
        $region26: #{tpu_custom_call.1} parent=23 // pred_check_branch
          %121 = sbr.rel (%p119) target = $region28
        $region27: #{tpu_custom_call.1} parent=23 // pred_region
          %123 = dma.done %s115, 512
        $region28: #{tpu_custom_call.1} parent=23 // pred_fallthru
          _
        %s124 = sand.u32 %s26, 1
        %s125 = scalar_lea.sflag [#allocation3], %s124
        %s126 = sand.u32 %s26, 1
        %s127 = smul.addr %s126, 32
        %s128 = scalar_lea.vmem [#allocation2], %s127
        %p129 = pneg %p39
        %p130 = pneg %p36
        %p131 = pneg %p65
        %p132 = pneg %p62
        %s133 = sand.u32 %s52, 1
        %s134 = scalar_lea.sflag [#allocation4], %s133
        %s135 = sand.u32 %s52, 1
        %s136 = smul.addr %s135, 32
        %s137 = scalar_lea.vmem [#allocation5], %s136
        %s138 = smul.u32 2, %s18
        %s139 = smul.u32 2, %s18
        %v140 = vld [vmem:[%s118] sm:$0xff]
        %v141 = vld [vmem:[%s118 + $0x8] sm:$0xff]
        %v142 = vld [vmem:[%s118 + $0x10] sm:$0xff]
        %v143 = vld [vmem:[%s118 + $0x18] sm:$0xff]
        %vm148 = vcmask 1040384
        %v149 = vrot.slane %v140, 7
        %v150 = vrot.slane %v141, 7
        %v151 = vsel %vm148, %v149, %v150
        %v152 = vrot.slane %v142, 7
        %v153 = vrot.slane %v143, 7
        %v154 = vsel %vm148, %v152, %v153
        %v161 = vsel %vm148, 0.0, %v149
        %v162 = vsel %vm148, 0.0, %v152
        %v163 = vsel %vm148, %v150, 0.0
        %v164 = vsel %vm148, %v153, 0.0
        %vm169 = vcmask 1046528
        %v170 = vrot.slane %v161, 1
        %v171 = vrot.slane %v151, 1
        %v172 = vsel %vm169, %v170, %v171
        %v173 = vrot.slane %v163, 1
        %v174 = vsel %vm169, %v171, %v173
        %v175 = vrot.slane %v162, 1
        %v176 = vrot.slane %v154, 1
        %v177 = vsel %vm169, %v175, %v176
        %v178 = vrot.slane %v164, 1
        %v179 = vsel %vm169, %v176, %v178
        %180 = vrot.lane.b32.xlu0 %v172, 16
        %v181 = vpop.permute.xlu0 %180
        %182 = vrot.lane.b32.xlu0 %v174, 16
        %v183 = vpop.permute.xlu0 %182
        %184 = vrot.lane.b32.xlu0 %v177, 16
        %v185 = vpop.permute.xlu0 %184
        %186 = vrot.lane.b32.xlu0 %v179, 16
        %v187 = vpop.permute.xlu0 %186
        %vm192 = vcmask 1045504
        %v193 = vrot.slane %v161, 2
        %v194 = vrot.slane %v151, 2
        %v195 = vsel %vm192, %v193, %v194
        %v196 = vrot.slane %v163, 2
        %v197 = vsel %vm192, %v194, %v196
        %v198 = vrot.slane %v162, 2
        %v199 = vrot.slane %v154, 2
        %v200 = vsel %vm192, %v198, %v199
        %v201 = vrot.slane %v164, 2
        %v202 = vsel %vm192, %v199, %v201
        %203 = vrot.lane.b32.xlu0 %v195, 32
        %v204 = vpop.permute.xlu0 %203
        %205 = vrot.lane.b32.xlu0 %v197, 32
        %v206 = vpop.permute.xlu0 %205
        %207 = vrot.lane.b32.xlu0 %v200, 32
        %v208 = vpop.permute.xlu0 %207
        %209 = vrot.lane.b32.xlu0 %v202, 32
        %v210 = vpop.permute.xlu0 %209
        %vm215 = vcmask 130048
        %v216 = vsel %vm215, %v161, %v181
        %v217 = vsel %vm215, %v151, %v183
        %v218 = vsel %vm215, %v162, %v185
        %v219 = vsel %vm215, %v154, %v187
        %vm220 = vcmask 261120
        %v221 = vsel %vm220, %v216, %v204
        %v222 = vsel %vm220, %v217, %v206
        %v223 = vsel %vm220, %v218, %v208
        %v224 = vsel %vm220, %v219, %v210
        %vm225 = vcmask 392192
        %226 = vst.msk [vmem:[%s137] sm:$0xff] %vm225, %v221
        %227 = vst.msk [vmem:[%s137 + $0x8] sm:$0xff] %vm225, %v222
        %228 = vst.msk [vmem:[%s137 + $0x10] sm:$0xff] %vm225, %v223
        %229 = vst.msk [vmem:[%s137 + $0x18] sm:$0xff] %vm225, %v224
        %s230 = sand.u32 %s52, 1
        %s231 = scalar_lea.sflag [#allocation4], %s230
        %s232 = sand.u32 %s52, 1
        %s233 = smul.addr %s232, 32
        %s234 = scalar_lea.vmem [#allocation5], %s233
        // Predicated region
        $region29: #{tpu_custom_call.1} parent=23 // pred_check
          %p235 = pneg %p62
        $region30: #{tpu_custom_call.1} parent=23 // pred_check_branch
          %237 = sbr.rel (%p235) target = $region32
        $region31: #{tpu_custom_call.1} parent=23 // pred_region
          %s238 = smul.u32 2, %s18
          %240 = vsyncadd %s231, 0
          %s241 = smul.addr %s238, 2
          %s242 = smul.addr %s241, 8
          %s243 = scalar_lea.hbm %s1, %s242
          %s244 = sshll.u32 %s234, 4
          %s245 = int_to_ptr.vmem [resolvable:$true] %s244
          %s246 = sshll.u32 %s243, 4
          %s247 = int_to_ptr.hbm [resolvable:$true] %s246
          %252 = dma.vmem_to_hbm [thread:$0]  %s245, 512, %s247, %s231, 128, 128, 8
        $region32: #{tpu_custom_call.1} parent=23 // pred_fallthru
          _
      $region24: #{tpu_custom_call.1} parent=5 // pred_fallthru
        _
      %p253 = scmp.le.s32.totalorder 2, %s13
      // Predicated region
      $region33: #{tpu_custom_call.1} parent=5 // pred_check
        %p254 = pneg %p253
      $region34: #{tpu_custom_call.1} parent=5 // pred_check_branch
        %256 = sbr.rel (%p254) target = $region36
      $region35: #{tpu_custom_call.1} parent=5 // pred_region
        %s257 = ssub.s32 %s13, 2
        // Predicated region
        $region37: #{tpu_custom_call.1} parent=35 // pred_check
          %p258 = pneg %p68
        $region38: #{tpu_custom_call.1} parent=35 // pred_check_branch
          %260 = sbr.rel (%p258) target = $region40
        $region39: #{tpu_custom_call.1} parent=35 // pred_region
          %s261 = sand.u32 %s53, 1
          %s262 = scalar_lea.sflag [#allocation4], %s261
          %s263 = sand.u32 %s53, 1
          %s264 = smul.addr %s263, 32
          %s265 = scalar_lea.vmem [#allocation5], %s264
          %267 = dma.done %s262, 512
        $region40: #{tpu_custom_call.1} parent=35 // pred_fallthru
          _
      $region36: #{tpu_custom_call.1} parent=5 // pred_fallthru
        _
    $region6: #{tpu_custom_call.1} parent=1 // loop_footer
      %s17 = sadd.s32 1, %s13
    $region7: #{tpu_custom_call.1} parent=1 // loop_footer_branch
      %12 = sbr.rel target = $region3
    $region8: #{tpu_custom_call.1} parent=1 // loop_exit
      _
    %268 = vsyncpa [#allocation3], 1
    %s269 = scalar_lea.sflag [#allocation3], 1
    %270 = vsyncpa %s269, 1
    %271 = vsyncpa [#allocation4], 1
    %s272 = scalar_lea.sflag [#allocation4], 1
    %273 = vsyncpa %s272, 1

// kernel: tpu_custom_call.1
$region0: #{tpu_custom_call.1}
  #allocation0 [shape = 'u32[]', space=smem, size = 0x4, offset = 0x4, fixed_abs, tag = 'smem constant byte address 0x4 - core index']
  #allocation1 [shape = 'u32[72,128]{1,0:T(1,128)}', space=vmem, size = 0x9000, scoped, tag = 'internal scratch']
  %s0 = inlined_call_operand.hbm [shape: f32[8,16,16], index: 0, kind: input, shape index: {}]
  %s1 = inlined_call_operand.hbm [shape: f32[8,16,48], index: 1, kind: output, shape index: {}]
  %s2 = sld [smem:[#allocation0]]
  $region41: #{tpu_custom_call.1} parent=0
    _
  %s4 = ssub.s32 1, %s2
  %s5 = scalar_select 0, %s4, %s2
  $region1: #{tpu_custom_call.1} parent=0
    #allocation2 [shape = 'u8[32768]{0}', space=vmem, size = 0x8000, scoped, tag = 'input window, operand 0']
    #allocation3 [shape = 's32[2]{0}', space=sflag, size = 0x8, scoped, tag = 'scoped memory for tpu_custom_call.1']
    #allocation4 [shape = 's32[2]{0}', space=sflag, size = 0x8, scoped, tag = 'scoped memory for tpu_custom_call.1']
    #allocation5 [shape = 'u8[32768]{0}', space=vmem, size = 0x8000, scoped, tag = 'output window, operand 0']
    %6 = vsyncpa [#allocation3], 0
    %s7 = scalar_lea.sflag [#allocation3], 1
    %8 = vsyncpa %s7, 0
    %9 = vsyncpa [#allocation4], 0
    %s10 = scalar_lea.sflag [#allocation4], 1
    %11 = vsyncpa %s10, 0
    loop: start=0, step=1, limit=6
    $region2: #{tpu_custom_call.1} parent=1 // loop_pre_header
      _
    $region3: #{tpu_custom_call.1} parent=1 // loop_header
      %s13 = sphi 0, %s17
      %p14 = scmp.ge.s32.totalorder %s13, 6
      %s23 = sphi 0, %s25
      %s26 = sphi 0, %s23
      %s27 = sphi 0, %s26
      %s43 = sphi 0, %s27
      %s49 = sphi 0, %s51
      %s52 = sphi 0, %s49
      %s53 = sphi 0, %s52
      %s69 = sphi 0, %s53
    $region4: #{tpu_custom_call.1} parent=1 // loop_header_branch
      %16 = sbr.rel (%p14) target = $region8
    $region5: #{tpu_custom_call.1} parent=1 // loop_body
      %s18 = ssub.s32 %s13, 1
      %s19 = ssub.s32 %s13, 2
      %s20 = sadd.s32 %s13, 1
      %s21 = ssub.s32 %s13, %s20
      %p22 = scmp.eq.s32.totalorder %s21, 0
      %s24 = sadd.s32 %s23, 1
      %s25 = scalar_select %p22, %s23, %s24
      %p28 = pneg %p22
      %p29 = scmp.eq.s32.totalorder %s13, 3
      %p30 = por %p28, %p29
      %p31 = scmp.ne.s32.totalorder %s23, %s26
      %p32 = scmp.eq.s32.totalorder %s13, 0
      %p33 = por %p31, %p32
      %p34 = scmp.ne.s32.totalorder %s23, %s26
      %p35 = scmp.eq.s32.totalorder %s18, 3
      %p36 = por %p34, %p35
      %p37 = scmp.ne.s32.totalorder %s26, %s27
      %p38 = scmp.eq.s32.totalorder %s18, 0
      %p39 = por %p37, %p38
      %p40 = scmp.ne.s32.totalorder %s26, %s27
      %p41 = scmp.eq.s32.totalorder %s19, 3
      %p42 = por %p40, %p41
      %p44 = scmp.ne.s32.totalorder %s27, %s43
      %p45 = scmp.eq.s32.totalorder %s19, 0
      %p46 = por %p44, %p45
      %s47 = ssub.s32 %s13, %s20
      %p48 = scmp.eq.s32.totalorder %s47, 0
      %s50 = sadd.s32 %s49, 1
      %s51 = scalar_select %p48, %s49, %s50
      %p54 = pneg %p48
      %p55 = scmp.eq.s32.totalorder %s13, 3
      %p56 = por %p54, %p55
      %p57 = scmp.ne.s32.totalorder %s49, %s52
      %p58 = scmp.eq.s32.totalorder %s13, 0
      %p59 = por %p57, %p58
      %p60 = scmp.ne.s32.totalorder %s49, %s52
      %p61 = scmp.eq.s32.totalorder %s18, 3
      %p62 = por %p60, %p61
      %p63 = scmp.ne.s32.totalorder %s52, %s53
      %p64 = scmp.eq.s32.totalorder %s18, 0
      %p65 = por %p63, %p64
      %p66 = scmp.ne.s32.totalorder %s52, %s53
      %p67 = scmp.eq.s32.totalorder %s19, 3
      %p68 = por %p66, %p67
      %p70 = scmp.ne.s32.totalorder %s53, %s69
      %p71 = scmp.eq.s32.totalorder %s19, 0
      %p72 = por %p70, %p71
      %p73 = scmp.le.s32.totalorder 1, %s13
      %p74 = scmp.lt.s32.totalorder %s13, 5
      %p75 = pnand %p73, %p74
      %p76 = pneg %p75
      // Predicated region
      $region9: #{tpu_custom_call.1} parent=5 // pred_check
        _
      $region10: #{tpu_custom_call.1} parent=5 // pred_check_branch
        %78 = sbr.rel (%p75) target = $region12
      $region11: #{tpu_custom_call.1} parent=5 // pred_region
        %s79 = ssub.s32 %s13, 1
      $region12: #{tpu_custom_call.1} parent=5 // pred_fallthru
        _
      %p80 = scmp.lt.s32.totalorder %s13, 4
      // Predicated region
      $region13: #{tpu_custom_call.1} parent=5 // pred_check
        %p81 = pneg %p80
      $region14: #{tpu_custom_call.1} parent=5 // pred_check_branch
        %83 = sbr.rel (%p81) target = $region16
      $region15: #{tpu_custom_call.1} parent=5 // pred_region
        // Predicated region
        $region17: #{tpu_custom_call.1} parent=15 // pred_check
          %p84 = pneg %p33
        $region18: #{tpu_custom_call.1} parent=15 // pred_check_branch
          %86 = sbr.rel (%p84) target = $region20
        $region19: #{tpu_custom_call.1} parent=15 // pred_region
          %s87 = sand.u32 %s23, 1
          %s88 = scalar_lea.sflag [#allocation3], %s87
          %s89 = sand.u32 %s23, 1
          %s90 = smul.addr %s89, 32
          %s91 = scalar_lea.vmem [#allocation2], %s90
          %s92 = smul.u32 2, %s13
          %94 = vsyncadd %s88, 0
          %s95 = smul.addr %s92, 2
          %s96 = smul.addr %s95, 8
          %s97 = scalar_lea.hbm %s0, %s96
          %s98 = sshll.u32 %s97, 4
          %s99 = int_to_ptr.hbm [resolvable:$true] %s98
          %s100 = sshll.u32 %s91, 4
          %s101 = int_to_ptr.vmem [resolvable:$true] %s100
          %106 = dma.hbm_to_vmem [thread:$0]  %s99, 512, %s101, %s88, 128, 128, 8
        $region20: #{tpu_custom_call.1} parent=15 // pred_fallthru
          _
      $region16: #{tpu_custom_call.1} parent=5 // pred_fallthru
        _
      %p107 = scmp.le.s32.totalorder 1, %s13
      %p108 = scmp.lt.s32.totalorder %s13, 5
      %p109 = pnand %p107, %p108
      %p110 = pneg %p109
      // Predicated region
      $region21: #{tpu_custom_call.1} parent=5 // pred_check
        _
      $region22: #{tpu_custom_call.1} parent=5 // pred_check_branch
        %112 = sbr.rel (%p109) target = $region24
      $region23: #{tpu_custom_call.1} parent=5 // pred_region
        %s113 = ssub.s32 %s13, 1
        %s114 = sand.u32 %s26, 1
        %s115 = scalar_lea.sflag [#allocation3], %s114
        %s116 = sand.u32 %s26, 1
        %s117 = smul.addr %s116, 32
        %s118 = scalar_lea.vmem [#allocation2], %s117
        // Predicated region
        $region25: #{tpu_custom_call.1} parent=23 // pred_check
          %p119 = pneg %p39
        $region26: #{tpu_custom_call.1} parent=23 // pred_check_branch
          %121 = sbr.rel (%p119) target = $region28
        $region27: #{tpu_custom_call.1} parent=23 // pred_region
          %123 = dma.done %s115, 512
        $region28: #{tpu_custom_call.1} parent=23 // pred_fallthru
          _
        %s124 = sand.u32 %s26, 1
        %s125 = scalar_lea.sflag [#allocation3], %s124
        %s126 = sand.u32 %s26, 1
        %s127 = smul.addr %s126, 32
        %s128 = scalar_lea.vmem [#allocation2], %s127
        %p129 = pneg %p39
        %p130 = pneg %p36
        %p131 = pneg %p65
        %p132 = pneg %p62
        %s133 = sand.u32 %s52, 1
        %s134 = scalar_lea.sflag [#allocation4], %s133
        %s135 = sand.u32 %s52, 1
        %s136 = smul.addr %s135, 32
        %s137 = scalar_lea.vmem [#allocation5], %s136
        %s138 = smul.u32 2, %s18
        %s139 = smul.u32 2, %s18
        %vm140 = vcmask 122880
        %141 = vst.msk [vmem:[%s137] sm:$0x1] %vm140, 0.0
        %142 = vst.msk [vmem:[%s137 + $0x10] sm:$0x1] %vm140, 0.0
        %v143 = vld [vmem:[%s118] sm:$0xff]
        %v144 = vld [vmem:[%s118 + $0x8] sm:$0x7f]
        %v145 = vld [vmem:[%s118 + $0x10] sm:$0xff]
        %v146 = vld [vmem:[%s118 + $0x18] sm:$0x7f]
        %vm147 = vcmask 130048
        %148 = vst.msk [vmem:[%s137 + $0x1] sm:$0xff] %vm147, %v143
        %vm149 = vcmask 129024
        %150 = vst.msk [vmem:[%s137 + $0x9] sm:$0x7f] %vm149, %v144
        %151 = vst.msk [vmem:[%s137 + $0x11] sm:$0xff] %vm147, %v145
        %152 = vst.msk [vmem:[%s137 + $0x19] sm:$0x7f] %vm149, %v146
        %v153 = vld [vmem:[%s118] sm:$0xff]
        %v154 = vld [vmem:[%s118 + $0x8] sm:$0xff]
        %v155 = vld [vmem:[%s118 + $0x10] sm:$0xff]
        %v156 = vld [vmem:[%s118 + $0x18] sm:$0xff]
        %161 = vrot.lane.b32.xlu0 %v153, 16
        %v162 = vpop.permute.xlu0 %161
        %163 = vrot.lane.b32.xlu0 %v154, 16
        %v164 = vpop.permute.xlu0 %163
        %165 = vrot.lane.b32.xlu0 %v155, 16
        %v166 = vpop.permute.xlu0 %165
        %167 = vrot.lane.b32.xlu0 %v156, 16
        %v168 = vpop.permute.xlu0 %167
        %vm173 = vcmask 261248
        %174 = vst.msk [vmem:[%s137] sm:$0xff] %vm173, %v162
        %175 = vst.msk [vmem:[%s137 + $0x8] sm:$0xff] %vm173, %v164
        %176 = vst.msk [vmem:[%s137 + $0x10] sm:$0xff] %vm173, %v166
        %177 = vst.msk [vmem:[%s137 + $0x18] sm:$0xff] %vm173, %v168
        %v178 = vld [vmem:[%s118 + $0x1] sm:$0xff]
        %v179 = vld [vmem:[%s118 + $0x9] sm:$0x7f]
        %v180 = vld [vmem:[%s118 + $0x11] sm:$0xff]
        %v181 = vld [vmem:[%s118 + $0x19] sm:$0x7f]
        %186 = vrot.lane.b32.xlu0 %v178, 32
        %v187 = vpop.permute.xlu0 %186
        %188 = vrot.lane.b32.xlu0 %v179, 32
        %v189 = vpop.permute.xlu0 %188
        %190 = vrot.lane.b32.xlu0 %v180, 32
        %v191 = vpop.permute.xlu0 %190
        %192 = vrot.lane.b32.xlu0 %v181, 32
        %v193 = vpop.permute.xlu0 %192
        %vm198 = vcmask 392448
        %199 = vst.msk [vmem:[%s137] sm:$0xff] %vm198, %v187
        %vm200 = vcmask 391424
        %201 = vst.msk [vmem:[%s137 + $0x8] sm:$0x7f] %vm200, %v189
        %202 = vst.msk [vmem:[%s137 + $0x10] sm:$0xff] %vm198, %v191
        %203 = vst.msk [vmem:[%s137 + $0x18] sm:$0x7f] %vm200, %v193
        %vm204 = vcmask 385280
        %205 = vst.msk [vmem:[%s137 + $0xf] sm:$0x1] %vm204, 0.0
        %206 = vst.msk [vmem:[%s137 + $0x1f] sm:$0x1] %vm204, 0.0
        %s207 = sand.u32 %s52, 1
        %s208 = scalar_lea.sflag [#allocation4], %s207
        %s209 = sand.u32 %s52, 1
        %s210 = smul.addr %s209, 32
        %s211 = scalar_lea.vmem [#allocation5], %s210
        // Predicated region
        $region29: #{tpu_custom_call.1} parent=23 // pred_check
          %p212 = pneg %p62
        $region30: #{tpu_custom_call.1} parent=23 // pred_check_branch
          %214 = sbr.rel (%p212) target = $region32
        $region31: #{tpu_custom_call.1} parent=23 // pred_region
          %s215 = smul.u32 2, %s18
          %217 = vsyncadd %s208, 0
          %s218 = smul.addr %s215, 2
          %s219 = smul.addr %s218, 8
          %s220 = scalar_lea.hbm %s1, %s219
          %s221 = sshll.u32 %s211, 4
          %s222 = int_to_ptr.vmem [resolvable:$true] %s221
          %s223 = sshll.u32 %s220, 4
          %s224 = int_to_ptr.hbm [resolvable:$true] %s223
          %229 = dma.vmem_to_hbm [thread:$0]  %s222, 512, %s224, %s208, 128, 128, 8
        $region32: #{tpu_custom_call.1} parent=23 // pred_fallthru
          _
      $region24: #{tpu_custom_call.1} parent=5 // pred_fallthru
        _
      %p230 = scmp.le.s32.totalorder 2, %s13
      // Predicated region
      $region33: #{tpu_custom_call.1} parent=5 // pred_check
        %p231 = pneg %p230
      $region34: #{tpu_custom_call.1} parent=5 // pred_check_branch
        %233 = sbr.rel (%p231) target = $region36
      $region35: #{tpu_custom_call.1} parent=5 // pred_region
        %s234 = ssub.s32 %s13, 2
        // Predicated region
        $region37: #{tpu_custom_call.1} parent=35 // pred_check
          %p235 = pneg %p68
        $region38: #{tpu_custom_call.1} parent=35 // pred_check_branch
          %237 = sbr.rel (%p235) target = $region40
        $region39: #{tpu_custom_call.1} parent=35 // pred_region
          %s238 = sand.u32 %s53, 1
          %s239 = scalar_lea.sflag [#allocation4], %s238
          %s240 = sand.u32 %s53, 1
          %s241 = smul.addr %s240, 32
          %s242 = scalar_lea.vmem [#allocation5], %s241
          %244 = dma.done %s239, 512
        $region40: #{tpu_custom_call.1} parent=35 // pred_fallthru
          _
      $region36: #{tpu_custom_call.1} parent=5 // pred_fallthru
        _
    $region6: #{tpu_custom_call.1} parent=1 // loop_footer
      %s17 = sadd.s32 1, %s13
    $region7: #{tpu_custom_call.1} parent=1 // loop_footer_branch
      %12 = sbr.rel target = $region3
    $region8: #{tpu_custom_call.1} parent=1 // loop_exit
      _
    %245 = vsyncpa [#allocation3], 1
    %s246 = scalar_lea.sflag [#allocation3], 1
    %247 = vsyncpa %s246, 1
    %248 = vsyncpa [#allocation4], 1
    %s249 = scalar_lea.sflag [#allocation4], 1
    %250 = vsyncpa %s249, 1

</llo_original>
